<compile_context>
chip_gen: v7x
topology: tpu7x:2x2x1
jax: 0.10.0
libtpu: 0.0.40
codegen_flags: <defaults>
</compile_context>

<pallas_src>
import math
from functools import partial

import jax
import jax.numpy as jnp
from jax.experimental import pallas as pl
from jax.experimental.pallas import tpu as pltpu

EPS = 1e-5  # nn.BatchNorm1d default eps

# Header layout: each small parameter gets its own 8-row (sublane-tile-aligned)
# block, value replicated across the 8 sublanes.
ROW_B0 = 0      # folded layer-0 bias:  beta_s @ W0 + b0       (width h1)
ROW_BN0G = 8    # BatchNorm1d(h1) gamma                        (width h1)
ROW_BN0B = 16   # BatchNorm1d(h1) beta                         (width h1)
ROW_B1 = 24     # layer-1 bias                                 (width h2)
ROW_WO = 32     # output weight as a row (W_out^T)             (width h2)
ROW_BO = 40     # output bias                                  (width 1)
HDR_ROWS = 48


def _round_up(x, m):
    return (x + m - 1) // m * m


def pack_params(p):
    """Fold the states-BN affine into layer 0 and pack every parameter into a
    single (rows, lanes) f32 slab so the kernel needs exactly one parameter DMA.

    Done once on the host (free algebra), not per forward call.  Layout:
      rows [0, 48)                      : 8-row-aligned header params
      rows [48, 48+ru8(S))              : W0' = gamma_s[:,None] * W0        (S x h1)
      rows [.., +ru8(h1))               : W1 state half                     (h1 x h2)
      rows [.., +ru8(A))                : W1 action half                    (A  x h2)
    """
    state_size, h1 = p["w0"].shape
    h1a, h2 = p["w1"].shape
    action_size = h1a - h1

    # Fold states-BN affine: (z*g + b) @ W0 + b0 == z @ (g[:,None]*W0) + (b@W0 + b0)
    w0 = p["w0"] * p["bns_g"].reshape(-1, 1)
    b0 = p["bns_b"].reshape(1, -1) @ p["w0"] + p["b0"].reshape(1, -1)

    lanes = max(128, _round_up(max(h1, h2), 128))
    w0_rows = _round_up(state_size, 8)
    w1s_rows = _round_up(h1, 8)
    w1a_rows = _round_up(action_size, 8)
    rows = HDR_ROWS + w0_rows + w1s_rows + w1a_rows

    def bcast8(v):
        v = v.reshape(1, -1)
        return jnp.broadcast_to(v, (8, v.shape[1]))

    slab = jnp.zeros((rows, lanes), jnp.float32)
    slab = slab.at[ROW_B0:ROW_B0 + 8, :h1].set(bcast8(b0))
    slab = slab.at[ROW_BN0G:ROW_BN0G + 8, :h1].set(bcast8(p["bn0_g"]))
    slab = slab.at[ROW_BN0B:ROW_BN0B + 8, :h1].set(bcast8(p["bn0_b"]))
    slab = slab.at[ROW_B1:ROW_B1 + 8, :h2].set(bcast8(p["b1"]))
    slab = slab.at[ROW_WO:ROW_WO + 8, :h2].set(bcast8(p["wo"].reshape(-1)))
    slab = slab.at[ROW_BO:ROW_BO + 8, :1].set(bcast8(p["bo"].reshape(-1)))

    w0_row0 = HDR_ROWS
    w1s_row0 = w0_row0 + w0_rows
    w1a_row0 = w1s_row0 + w1s_rows
    slab = slab.at[w0_row0:w0_row0 + state_size, :h1].set(w0)
    slab = slab.at[w1s_row0:w1s_row0 + h1, :h2].set(p["w1"][:h1])
    slab = slab.at[w1a_row0:w1a_row0 + action_size, :h2].set(p["w1"][h1:])
    return slab


def critic_kernel(states_ref, actions_ref, p_ref, out_ref, *,
                  state_size, action_size, h1, h2,
                  w0_row0, w1s_row0, w1a_row0, inv_b):
    x = states_ref[...].astype(jnp.float32)       # (B, S)
    a = actions_ref[...].astype(jnp.float32)      # (B, A)

    # ---- states_normalizer (train-mode batch stats, single pass).
    # Affine (gamma/beta) is folded into W0/b0 by pack_params.  Variance is
    # clamped to >=0 to guard against f32 cancellation in E[x^2] - mean^2.
    mean = jnp.sum(x, axis=0, keepdims=True) * inv_b
    var = jnp.maximum(
        jnp.sum(x * x, axis=0, keepdims=True) * inv_b - mean * mean, 0.0)
    inv_std = jax.lax.rsqrt(var + EPS)            # (1, S) row
    z = x * inv_std + (-mean * inv_std)           # == (x - mean) * inv_std

    # ---- layer 0: Linear(S -> h1) (with folded states-BN affine), BN(h1), relu
    w0 = p_ref[w0_row0:w0_row0 + state_size, 0:h1]
    b0 = p_ref[ROW_B0:ROW_B0 + 1, 0:h1]
    h = jnp.dot(z, w0, preferred_element_type=jnp.float32) + b0
    hm = jnp.sum(h, axis=0, keepdims=True) * inv_b
    hv = jnp.maximum(
        jnp.sum(h * h, axis=0, keepdims=True) * inv_b - hm * hm, 0.0)
    # BN0 affine fused into the (1, h1) scale/shift rows: one mul + one add on (B, h1).
    scale = p_ref[ROW_BN0G:ROW_BN0G + 1, 0:h1] * jax.lax.rsqrt(hv + EPS)
    shift = p_ref[ROW_BN0B:ROW_BN0B + 1, 0:h1] - hm * scale
    h = jnp.maximum(h * scale + shift, 0.0)

    # ---- layer 1: Linear(h1 + A -> h2) as split matmul (== concat([h, a]) @ W1), relu
    w1s = p_ref[w1s_row0:w1s_row0 + h1, 0:h2]
    y = (jnp.dot(h, w1s, preferred_element_type=jnp.float32)
         + p_ref[ROW_B1:ROW_B1 + 1, 0:h2])
    if action_size <= 8:
        # Tiny K: rank-1 VPU FMAs instead of wasting an MXU push/drain on K=A MACs.
        for j in range(action_size):
            y = y + a[:, j:j + 1] * p_ref[w1a_row0 + j:w1a_row0 + j + 1, 0:h2]
    else:
        w1a = p_ref[w1a_row0:w1a_row0 + action_size, 0:h2]
        y = y + jnp.dot(a, w1a, preferred_element_type=jnp.float32)
    y = jnp.maximum(y, 0.0)

    # dropout(p=0.2): identity in this deterministic forward
    # TODO(synk): stochastic dropout mask (pltpu.prng_seed/prng_random_bits) not implemented.

    # ---- output: (B,h2)@(h2,1) replaced by VPU multiply + lane reduction
    wo = p_ref[ROW_WO:ROW_WO + 1, 0:h2]
    bo = p_ref[ROW_BO:ROW_BO + 1, 0:1]
    q = jnp.sum(y * wo, axis=-1, keepdims=True) + bo
    # TODO(synk): for very large B, emit a lane-dense (1, B) output instead of
    # (B, 1) to avoid one masked 1-lane store per 8 rows; irrelevant at small B.
    out_ref[...] = q.astype(out_ref.dtype)


@partial(jax.jit, static_argnames=("state_size", "action_size", "h1", "h2"))
def critic_forward(states, actions, param_slab, *, state_size, action_size, h1, h2):
    B = states.shape[0]
    w0_row0 = HDR_ROWS
    w1s_row0 = w0_row0 + _round_up(state_size, 8)
    w1a_row0 = w1s_row0 + _round_up(h1, 8)
    kernel = partial(critic_kernel,
                     state_size=state_size, action_size=action_size,
                     h1=h1, h2=h2, w0_row0=w0_row0, w1s_row0=w1s_row0,
                     w1a_row0=w1a_row0, inv_b=1.0 / B)
    vmem = pl.BlockSpec(memory_space=pltpu.MemorySpace.VMEM)
    # TODO(synk): for large B (and to use v7x's second TensorCore), add a
    # batch-tiled grid with dimension_semantics=("parallel",), a constant-index
    # BlockSpec for param_slab (so the slab is not re-DMA'd per tile) and a
    # two-phase BatchNorm (cross-tile stats pass + normalized forward).
    # Whole-batch single invocation is optimal at small B (overhead-bound).
    return pl.pallas_call(
        kernel,
        out_shape=jax.ShapeDtypeStruct((B, 1), jnp.float32),
        in_specs=[vmem, vmem, vmem],
        out_specs=vmem,
    )(states, actions, param_slab)


def init_params(key, state_size, action_size, hidden_units=(64, 32)):
    """Deterministic init mimicking Critic.reset_parameters / PyTorch defaults.

    hidden_init() in the reference uses weight.size()[0] == out_features, so the
    uniform limit is 1/sqrt(out_features) (reproduced verbatim).  Weights are
    stored transposed, i.e. (in_features, out_features).
    """
    h1, h2 = hidden_units
    ks = jax.random.split(key, 6)
    u = jax.random.uniform

    lim0 = 1.0 / math.sqrt(h1)
    lim1 = 1.0 / math.sqrt(h2)
    blim0 = 1.0 / math.sqrt(state_size)            # PyTorch default bias: 1/sqrt(fan_in)
    blim1 = 1.0 / math.sqrt(h1 + action_size)
    blimo = 1.0 / math.sqrt(h2)

    return {
        "bns_g": jnp.ones((state_size,), jnp.float32),
        "bns_b": jnp.zeros((state_size,), jnp.float32),
        "w0": u(ks[0], (state_size, h1), jnp.float32, -lim0, lim0),
        "b0": u(ks[1], (h1,), jnp.float32, -blim0, blim0),
        "bn0_g": jnp.ones((h1,), jnp.float32),
        "bn0_b": jnp.zeros((h1,), jnp.float32),
        "w1": u(ks[2], (h1 + action_size, h2), jnp.float32, -lim1, lim1),
        "b1": u(ks[3], (h2,), jnp.float32, -blim1, blim1),
        "wo": u(ks[4], (h2, 1), jnp.float32, -3e-3, 3e-3),
        "bo": u(ks[5], (1,), jnp.float32, -blimo, blimo),
    }


def critic_reference(states, actions, p):
    """Pure-JAX reference (un-folded, two-pass BN) for correctness checking."""
    def bn(x, g, b):
        mean = jnp.mean(x, axis=0, keepdims=True)
        var = jnp.mean((x - mean) ** 2, axis=0, keepdims=True)
        return (x - mean) * jax.lax.rsqrt(var + EPS) * g + b
    xs = bn(states, p["bns_g"], p["bns_b"])
    h = jnp.maximum(bn(xs @ p["w0"] + p["b0"], p["bn0_g"], p["bn0_b"]), 0.0)
    x = jnp.concatenate([h, actions], axis=1)
    y = jnp.maximum(x @ p["w1"] + p["b1"], 0.0)
    return y @ p["wo"] + p["bo"]


if __name__ == "__main__":
    key = jax.random.PRNGKey(0)
    B, state_size, action_size = 8, 24, 2
    hidden_units = (64, 32)

    kp, kst, kac = jax.random.split(key, 3)
    params = init_params(kp, state_size, action_size, hidden_units)
    param_slab = pack_params(params)   # one-time host-side fold + pack (single DMA per call)

    states = jax.random.normal(kst, (B, state_size), jnp.float32)
    actions = jax.random.uniform(kac, (B, action_size), jnp.float32, minval=-1.0, maxval=1.0)

    q = critic_forward(states, actions, param_slab,
                       state_size=state_size, action_size=action_size,
                       h1=hidden_units[0], h2=hidden_units[1])
    jax.block_until_ready(q)
    assert q.shape == (B, 1) and q.dtype == jnp.float32

    q_ref = critic_reference(states, actions, params)
    assert jnp.allclose(q, q_ref, atol=1e-4, rtol=1e-3), (q, q_ref)

    print("KERNEL_OK")
</pallas_src>

<mosaic_0001>
module attributes {stable_mosaic.version = 11 : i64} {
  func.func @critic_kernel(%arg0: memref<8x24xf32, #tpu.memory_space<vmem>>, %arg1: memref<8x2xf32, #tpu.memory_space<vmem>>, %arg2: memref<144x128xf32, #tpu.memory_space<vmem>>, %arg3: memref<8x1xf32, #tpu.memory_space<vmem>>) attributes {dimension_semantics = [], scalar_prefetch = 0 : i64, scratch_operands = 0 : i64, tpu.core_type = #tpu.core_type<tc>} {
    %c0 = arith.constant 0 : index
    %c0_0 = arith.constant 0 : index
    %0 = vector.load %arg0[%c0, %c0_0] : memref<8x24xf32, #tpu.memory_space<vmem>>, vector<8x24xf32>
    %c0_1 = arith.constant 0 : index
    %c0_2 = arith.constant 0 : index
    %1 = vector.load %arg1[%c0_1, %c0_2] : memref<8x2xf32, #tpu.memory_space<vmem>>, vector<8x2xf32>
    %cst = arith.constant dense<0.000000e+00> : vector<24xf32>
    %2 = vector.multi_reduction <add>, %0, %cst [0] : vector<8x24xf32> to vector<24xf32>
    %3 = vector.shape_cast %2 : vector<24xf32> to vector<1x24xf32>
    %cst_3 = arith.constant 1.250000e-01 : f32
    %4 = vector.broadcast %cst_3 : f32 to vector<1x24xf32>
    %5 = arith.mulf %3, %4 : vector<1x24xf32>
    %6 = arith.mulf %0, %0 : vector<8x24xf32>
    %cst_4 = arith.constant dense<0.000000e+00> : vector<24xf32>
    %7 = vector.multi_reduction <add>, %6, %cst_4 [0] : vector<8x24xf32> to vector<24xf32>
    %8 = vector.shape_cast %7 : vector<24xf32> to vector<1x24xf32>
    %cst_5 = arith.constant 1.250000e-01 : f32
    %9 = vector.broadcast %cst_5 : f32 to vector<1x24xf32>
    %10 = arith.mulf %8, %9 : vector<1x24xf32>
    %11 = arith.mulf %5, %5 : vector<1x24xf32>
    %12 = arith.subf %10, %11 : vector<1x24xf32>
    %cst_6 = arith.constant 0.000000e+00 : f32
    %13 = vector.broadcast %cst_6 : f32 to vector<1x24xf32>
    %14 = arith.maximumf %12, %13 : vector<1x24xf32>
    %cst_7 = arith.constant 9.99999974E-6 : f32
    %15 = vector.broadcast %cst_7 : f32 to vector<1x24xf32>
    %16 = arith.addf %14, %15 : vector<1x24xf32>
    %17 = math.rsqrt %16 : vector<1x24xf32>
    %18 = vector.broadcast %17 : vector<1x24xf32> to vector<8x24xf32>
    %19 = arith.mulf %0, %18 : vector<8x24xf32>
    %cst_8 = arith.constant 0.000000e+00 : f32
    %20 = vector.broadcast %cst_8 : f32 to vector<1x24xf32>
    %21 = arith.subf %20, %5 : vector<1x24xf32>
    %22 = arith.mulf %21, %17 : vector<1x24xf32>
    %23 = vector.broadcast %22 : vector<1x24xf32> to vector<8x24xf32>
    %24 = arith.addf %19, %23 : vector<8x24xf32>
    %c48 = arith.constant 48 : index
    %c0_9 = arith.constant 0 : index
    %25 = vector.load %arg2[%c48, %c0_9] : memref<144x128xf32, #tpu.memory_space<vmem>>, vector<24x64xf32>
    %c0_10 = arith.constant 0 : index
    %c0_11 = arith.constant 0 : index
    %26 = vector.load %arg2[%c0_10, %c0_11] : memref<144x128xf32, #tpu.memory_space<vmem>>, vector<1x64xf32>
    %cst_12 = arith.constant dense<0.000000e+00> : vector<8x64xf32>
    %27 = tpu.matmul %24, %25, %cst_12 {dimension_numbers = #tpu.dot_dimension_numbers<[1], [0], [0], [1], [0, 0, 1, 1], [], []>} : vector<8x24xf32>, vector<24x64xf32>, vector<8x64xf32> -> vector<8x64xf32>
    %28 = vector.broadcast %26 : vector<1x64xf32> to vector<8x64xf32>
    %29 = arith.addf %27, %28 : vector<8x64xf32>
    %cst_13 = arith.constant dense<0.000000e+00> : vector<64xf32>
    %30 = vector.multi_reduction <add>, %29, %cst_13 [0] : vector<8x64xf32> to vector<64xf32>
    %31 = vector.shape_cast %30 : vector<64xf32> to vector<1x64xf32>
    %cst_14 = arith.constant 1.250000e-01 : f32
    %32 = vector.broadcast %cst_14 : f32 to vector<1x64xf32>
    %33 = arith.mulf %31, %32 : vector<1x64xf32>
    %34 = arith.mulf %29, %29 : vector<8x64xf32>
    %cst_15 = arith.constant dense<0.000000e+00> : vector<64xf32>
    %35 = vector.multi_reduction <add>, %34, %cst_15 [0] : vector<8x64xf32> to vector<64xf32>
    %36 = vector.shape_cast %35 : vector<64xf32> to vector<1x64xf32>
    %cst_16 = arith.constant 1.250000e-01 : f32
    %37 = vector.broadcast %cst_16 : f32 to vector<1x64xf32>
    %38 = arith.mulf %36, %37 : vector<1x64xf32>
    %39 = arith.mulf %33, %33 : vector<1x64xf32>
    %40 = arith.subf %38, %39 : vector<1x64xf32>
    %cst_17 = arith.constant 0.000000e+00 : f32
    %41 = vector.broadcast %cst_17 : f32 to vector<1x64xf32>
    %42 = arith.maximumf %40, %41 : vector<1x64xf32>
    %c8 = arith.constant 8 : index
    %c0_18 = arith.constant 0 : index
    %43 = vector.load %arg2[%c8, %c0_18] : memref<144x128xf32, #tpu.memory_space<vmem>>, vector<1x64xf32>
    %cst_19 = arith.constant 9.99999974E-6 : f32
    %44 = vector.broadcast %cst_19 : f32 to vector<1x64xf32>
    %45 = arith.addf %42, %44 : vector<1x64xf32>
    %46 = math.rsqrt %45 : vector<1x64xf32>
    %47 = arith.mulf %43, %46 : vector<1x64xf32>
    %c16 = arith.constant 16 : index
    %c0_20 = arith.constant 0 : index
    %48 = vector.load %arg2[%c16, %c0_20] : memref<144x128xf32, #tpu.memory_space<vmem>>, vector<1x64xf32>
    %49 = arith.mulf %33, %47 : vector<1x64xf32>
    %50 = arith.subf %48, %49 : vector<1x64xf32>
    %51 = vector.broadcast %47 : vector<1x64xf32> to vector<8x64xf32>
    %52 = arith.mulf %29, %51 : vector<8x64xf32>
    %53 = vector.broadcast %50 : vector<1x64xf32> to vector<8x64xf32>
    %54 = arith.addf %52, %53 : vector<8x64xf32>
    %cst_21 = arith.constant 0.000000e+00 : f32
    %55 = vector.broadcast %cst_21 : f32 to vector<8x64xf32>
    %56 = arith.maximumf %54, %55 : vector<8x64xf32>
    %c72 = arith.constant 72 : index
    %c0_22 = arith.constant 0 : index
    %57 = vector.load %arg2[%c72, %c0_22] : memref<144x128xf32, #tpu.memory_space<vmem>>, vector<64x32xf32>
    %cst_23 = arith.constant dense<0.000000e+00> : vector<8x32xf32>
    %58 = tpu.matmul %56, %57, %cst_23 {dimension_numbers = #tpu.dot_dimension_numbers<[1], [0], [0], [1], [0, 0, 1, 1], [], []>} : vector<8x64xf32>, vector<64x32xf32>, vector<8x32xf32> -> vector<8x32xf32>
    %c24 = arith.constant 24 : index
    %c0_24 = arith.constant 0 : index
    %59 = vector.load %arg2[%c24, %c0_24] : memref<144x128xf32, #tpu.memory_space<vmem>>, vector<1x32xf32>
    %60 = vector.broadcast %59 : vector<1x32xf32> to vector<8x32xf32>
    %61 = arith.addf %58, %60 : vector<8x32xf32>
    %62 = vector.extract_strided_slice %1 {offsets = [0, 0], sizes = [8, 1], strides = [1, 1]} : vector<8x2xf32> to vector<8x1xf32>
    %c136 = arith.constant 136 : index
    %c0_25 = arith.constant 0 : index
    %63 = vector.load %arg2[%c136, %c0_25] : memref<144x128xf32, #tpu.memory_space<vmem>>, vector<1x32xf32>
    %64 = vector.broadcast %62 : vector<8x1xf32> to vector<8x32xf32>
    %65 = vector.broadcast %63 : vector<1x32xf32> to vector<8x32xf32>
    %66 = arith.mulf %64, %65 : vector<8x32xf32>
    %67 = arith.addf %61, %66 : vector<8x32xf32>
    %68 = vector.extract_strided_slice %1 {offsets = [0, 1], sizes = [8, 1], strides = [1, 1]} : vector<8x2xf32> to vector<8x1xf32>
    %c137 = arith.constant 137 : index
    %c0_26 = arith.constant 0 : index
    %69 = vector.load %arg2[%c137, %c0_26] : memref<144x128xf32, #tpu.memory_space<vmem>>, vector<1x32xf32>
    %70 = vector.broadcast %68 : vector<8x1xf32> to vector<8x32xf32>
    %71 = vector.broadcast %69 : vector<1x32xf32> to vector<8x32xf32>
    %72 = arith.mulf %70, %71 : vector<8x32xf32>
    %73 = arith.addf %67, %72 : vector<8x32xf32>
    %cst_27 = arith.constant 0.000000e+00 : f32
    %74 = vector.broadcast %cst_27 : f32 to vector<8x32xf32>
    %75 = arith.maximumf %73, %74 : vector<8x32xf32>
    %c32 = arith.constant 32 : index
    %c0_28 = arith.constant 0 : index
    %76 = vector.load %arg2[%c32, %c0_28] : memref<144x128xf32, #tpu.memory_space<vmem>>, vector<1x32xf32>
    %c40 = arith.constant 40 : index
    %c0_29 = arith.constant 0 : index
    %77 = vector.load %arg2[%c40, %c0_29] : memref<144x128xf32, #tpu.memory_space<vmem>>, vector<1x1xf32>
    %78 = vector.broadcast %76 : vector<1x32xf32> to vector<8x32xf32>
    %79 = arith.mulf %75, %78 : vector<8x32xf32>
    %cst_30 = arith.constant dense<0.000000e+00> : vector<8xf32>
    %80 = vector.multi_reduction <add>, %79, %cst_30 [1] : vector<8x32xf32> to vector<8xf32>
    %81 = vector.shape_cast %80 : vector<8xf32> to vector<8x1xf32>
    %82 = vector.broadcast %77 : vector<1x1xf32> to vector<8x1xf32>
    %83 = arith.addf %81, %82 : vector<8x1xf32>
    %c0_31 = arith.constant 0 : index
    %c0_32 = arith.constant 0 : index
    %84 = vector.load %arg3[%c0_31, %c0_32] : memref<8x1xf32, #tpu.memory_space<vmem>>, vector<8x1xf32>
    tpu.vector_store %arg3[%c0_31, %c0_32], %83 {strides = array<i32>} : memref<8x1xf32, #tpu.memory_space<vmem>>, vector<8x1xf32>,
    return
  }
}

</mosaic_0001>

<llo_original>
// kernel: critic_forward.1
$region0: #{critic_forward.1}
  #allocation0 [shape = 'u32[]', space=smem, size = 0x4, offset = 0x4, fixed_abs, tag = 'smem constant byte address 0x4 - core index']
  #allocation1 [shape = 'u32[144,128]{1,0:T(1,128)}', space=vmem, size = 0x12000, scoped, tag = 'internal scratch']
  %s0 = inlined_call_operand.vmem [shape: f32[8,24], index: 0, kind: input, shape index: {}]
  %s1 = inlined_call_operand.vmem [shape: f32[8,2], index: 1, kind: input, shape index: {}]
  %s2 = inlined_call_operand.hbm [shape: f32[144,128], index: 2, kind: input, shape index: {}]
  %s3 = inlined_call_operand.vmem [shape: f32[8,1], index: 3, kind: output, shape index: {}]
  %s4 = sld [smem:[#allocation0]]
  $region26: #{critic_forward.1} parent=0
    _
  %s6 = ssub.s32 1, %s4
  %s7 = scalar_select 0, %s6, %s4
  $region1: #{critic_forward.1} parent=0
    #allocation2 [shape = 'u8[73728]{0}', space=vmem, size = 0x12000, scoped, tag = 'input window, operand 2, single buffered']
    #allocation3 [shape = 's32[1]{0}', space=sflag, size = 0x4, scoped, tag = 'scoped memory for critic_forward.1']
    %8 = vsyncpa [#allocation3], 0
    // Predicated region
    $region2: #{critic_forward.1} parent=1 // pred_check
      _
    $region3: #{critic_forward.1} parent=1 // pred_check_branch
      %10 = sbr.rel (0) target = $region5
    $region4: #{critic_forward.1} parent=1 // pred_region
      _
    $region5: #{critic_forward.1} parent=1 // pred_fallthru
      _
    // Predicated region
    $region6: #{critic_forward.1} parent=1 // pred_check
      _
    $region7: #{critic_forward.1} parent=1 // pred_check_branch
      %12 = sbr.rel (0) target = $region9
    $region8: #{critic_forward.1} parent=1 // pred_region
      _
    $region9: #{critic_forward.1} parent=1 // pred_fallthru
      _
    // Predicated region
    $region10: #{critic_forward.1} parent=1 // pred_check
      _
    $region11: #{critic_forward.1} parent=1 // pred_check_branch
      %14 = sbr.rel (0) target = $region13
    $region12: #{critic_forward.1} parent=1 // pred_region
      %s16 = ssub.s32 2304, 2304
      %17 = vsyncadd [#allocation3], %s16
      %s18 = sshll.u32 [#allocation2], 4
      %s19 = int_to_ptr.vmem [resolvable:$true] %s18
      %24 = dma.hbm_to_vmem [thread:$0]  %s2, 2304, %s19, [#allocation3], 128, 128, 8
    $region13: #{critic_forward.1} parent=1 // pred_fallthru
      _
    // Predicated region
    $region14: #{critic_forward.1} parent=1 // pred_check
      _
    $region15: #{critic_forward.1} parent=1 // pred_check_branch
      %26 = sbr.rel (0) target = $region17
    $region16: #{critic_forward.1} parent=1 // pred_region
      %27 = dma.done [#allocation3], 2304
    $region17: #{critic_forward.1} parent=1 // pred_fallthru
      _
    %v28 = vld [vmem:[%s0] sm:$0xff]
    %v29 = vld [vmem:[%s1] sm:$0xff]
    %vm30 = vcmask 195584
    %v31 = vsel %vm30, %v28, 0.0
    %v32 = vrot.slane %v31, 4
    %v33 = vadd.f32 %v31, %v32
    %v34 = vrot.slane %v33, 2
    %v35 = vadd.f32 %v33, %v34
    %v36 = vrot.slane %v35, 1
    %v37 = vadd.f32 %v35, %v36
    %v38 = vmul.f32 %v37, 0.125
    %v39 = vmul.f32 %v28, %v28
    %v40 = vsel %vm30, %v39, 0.0
    %v41 = vrot.slane %v40, 4
    %v42 = vadd.f32 %v40, %v41
    %v43 = vrot.slane %v42, 2
    %v44 = vadd.f32 %v42, %v43
    %v45 = vrot.slane %v44, 1
    %v46 = vadd.f32 %v44, %v45
    %v47 = vmul.f32 %v46, 0.125
    %v48 = vmul.f32 %v38, %v38
    %v49 = vsub.f32 %v47, %v48
    %v50 = vmax.f32 %v49, 0.0
    %v51 = vadd.f32 %v50, 1e-05
    %v52 = vrsqrt.pop %v51
    %v53 = vmul.f32 %v28, %v52
    %v54 = vsub.f32 0.0, %v38
    %v55 = vmul.f32 %v54, %v52
    %v56 = vadd.f32 %v53, %v55
    %v57 = vld [vmem:[#allocation2 + $0x30] sm:$0xff]
    %v58 = vld [vmem:[#allocation2 + $0x38] sm:$0xff]
    %v59 = vld [vmem:[#allocation2 + $0x40] sm:$0xff]
    %v60 = vld [vmem:[#allocation2] sm:$0x1]
    %v61 = vlaneseq
    %v62 = vshrl.u32 %v61, 7
    %v63 = vsub.s32 0, %v62
    %v64 = vrot.slane %v60, %v63
    %v66 = vsel %vm30, %v56, 0
    %68 = vmatprep.subr.mxu0 0.0
    %69 = vmatpush1.msra.mxu0 %v57
    %70 = vmatprep.subr.mxu0 0.0
    %71 = vmatpush1.msra.mxu0 %v58
    %72 = vmatprep.subr.mxu0 0.0
    %73 = vmatpush1.msra.mxu0 %v59
    %74 = vmatprep.subr.mxu0 0.0
    %75 = vmatpush1.msra.mxu0 0.0
    %76 = vmatprep.subr.mxu0 0.0
    %77 = vmatpush1.msra.mxu0 0.0
    %78 = vmatprep.subr.mxu0 0.0
    %79 = vmatpush1.msra.mxu0 0.0
    %80 = vmatprep.subr.mxu0 0.0
    %81 = vmatpush1.msra.mxu0 0.0
    %82 = vmatprep.subr.mxu0 0.0
    %83 = vmatpush1.msra.mxu0 0.0
    %84 = vmatprep.subr.mxu0 0.0
    %85 = vmatpush1.msra.mxu0 0.0
    %86 = vmatprep.subr.mxu0 0.0
    %87 = vmatpush1.msra.mxu0 0.0
    %88 = vmatprep.subr.mxu0 0.0
    %89 = vmatpush1.msra.mxu0 0.0
    %90 = vmatprep.subr.mxu0 0.0
    %91 = vmatpush1.msra.mxu0 0.0
    %92 = vmatprep.subr.mxu0 0.0
    %93 = vmatpush1.msra.mxu0 0.0
    %94 = vmatprep.subr.mxu0 0.0
    %95 = vmatpush1.msra.mxu0 0.0
    %96 = vmatprep.subr.mxu0 0.0
    %97 = vmatpush1.msra.mxu0 0.0
    %98 = vmatprep.subr.mxu0 0.0
    %99 = vmatpush1.msra.mxu0 0.0
    %100 = vmatprep.subr.mxu0 0.0
    %101 = vmatpush1.msra.mxu0 0.0
    %102 = vmatprep.subr.mxu0 0.0
    %103 = vmatpush1.msra.mxu0 0.0
    %104 = vmatprep.subr.mxu0 0.0
    %105 = vmatpush1.msra.mxu0 0.0
    %106 = vmatprep.subr.mxu0 0.0
    %107 = vmatpush1.msra.mxu0 0.0
    %108 = vmatprep.subr.mxu0 0.0
    %109 = vmatpush1.msra.mxu0 0.0
    %110 = vmatprep.subr.mxu0 0.0
    %111 = vmatpush1.msra.mxu0 0.0
    %112 = vmatprep.subr.mxu0 0.0
    %113 = vmatpush1.msra.mxu0 0.0
    %114 = vmatprep.subr.mxu0 0.0
    %115 = vmatpush1.msra.mxu0 0.0
    %116 = vmatprep.subr.mxu0 0.0
    %117 = vmatpush1.msra.mxu0 0.0
    %118 = vmatprep.subr.mxu0 0.0
    %119 = vmatpush1.msra.mxu0 0.0
    %120 = vmatprep.subr.mxu0 0.0
    %121 = vmatpush1.msra.mxu0 0.0
    %122 = vmatprep.subr.mxu0 0.0
    %123 = vmatpush1.msra.mxu0 0.0
    %124 = vmatprep.subr.mxu0 0.0
    %125 = vmatpush1.msra.mxu0 0.0
    %126 = vmatprep.subr.mxu0 0.0
    %127 = vmatpush1.msra.mxu0 0.0
    %128 = vmatprep.subr.mxu0 0.0
    %129 = vmatpush1.msra.mxu0 0.0
    %130 = vmatprep.subr.mxu0 0.0
    %131 = vmatpush1.msra.mxu0 0.0
    %132 = vmatprep.mubr.f32.mxu0 0.0
    %133 = vmatmul.mubr.f32.gmra.mrb[0].mxu0 %v66
    %v134 = vpop.f32.mrb[0].mxu0
    %v135 = vadd.f32 %v64, %v134
    %v136 = vpop.f32.mrb[0].mxu0
    %137 = vdwg.mxu0
    %vm138 = vcmask 523264
    %v139 = vsel %vm138, %v135, 0.0
    %v140 = vrot.slane %v139, 4
    %v141 = vadd.f32 %v139, %v140
    %v142 = vrot.slane %v141, 2
    %v143 = vadd.f32 %v141, %v142
    %v144 = vrot.slane %v143, 1
    %v145 = vadd.f32 %v143, %v144
    %v146 = vmul.f32 %v145, 0.125
    %v147 = vmul.f32 %v135, %v135
    %v148 = vsel %vm138, %v147, 0.0
    %v149 = vrot.slane %v148, 4
    %v150 = vadd.f32 %v148, %v149
    %v151 = vrot.slane %v150, 2
    %v152 = vadd.f32 %v150, %v151
    %v153 = vrot.slane %v152, 1
    %v154 = vadd.f32 %v152, %v153
    %v155 = vmul.f32 %v154, 0.125
    %v156 = vmul.f32 %v146, %v146
    %v157 = vsub.f32 %v155, %v156
    %v158 = vmax.f32 %v157, 0.0
    %v159 = vld [vmem:[#allocation2 + $0x8] sm:$0x1]
    %v160 = vadd.f32 %v158, 1e-05
    %v161 = vrsqrt.pop %v160
    %v162 = vmul.f32 %v159, %v161
    %v163 = vld [vmem:[#allocation2 + $0x10] sm:$0x1]
    %v164 = vmul.f32 %v146, %v162
    %v165 = vsub.f32 %v163, %v164
    %v166 = vlaneseq
    %v167 = vshrl.u32 %v166, 7
    %v168 = vsub.s32 0, %v167
    %v169 = vrot.slane %v162, %v168
    %v170 = vmul.f32 %v135, %v169
    %v171 = vlaneseq
    %v172 = vshrl.u32 %v171, 7
    %v173 = vsub.s32 0, %v172
    %v174 = vrot.slane %v165, %v173
    %v175 = vadd.f32 %v170, %v174
    %v176 = vmax.f32 %v175, 0.0
    %v177 = vld [vmem:[#allocation2 + $0x48] sm:$0xff]
    %v178 = vld [vmem:[#allocation2 + $0x50] sm:$0xff]
    %v179 = vld [vmem:[#allocation2 + $0x58] sm:$0xff]
    %v180 = vld [vmem:[#allocation2 + $0x60] sm:$0xff]
    %v181 = vld [vmem:[#allocation2 + $0x68] sm:$0xff]
    %v182 = vld [vmem:[#allocation2 + $0x70] sm:$0xff]
    %v183 = vld [vmem:[#allocation2 + $0x78] sm:$0xff]
    %v184 = vld [vmem:[#allocation2 + $0x80] sm:$0xff]
    %v185 = vld [vmem:[#allocation2 + $0x18] sm:$0x1]
    %v186 = vlaneseq
    %v187 = vshrl.u32 %v186, 7
    %v188 = vsub.s32 0, %v187
    %v189 = vrot.slane %v185, %v188
    %v191 = vsel %vm138, %v176, 0
    %193 = vmatprep.subr.mxu0 0.0
    %194 = vmatpush1.msra.mxu0 %v177
    %195 = vmatprep.subr.mxu0 0.0
    %196 = vmatpush1.msra.mxu0 %v178
    %197 = vmatprep.subr.mxu0 0.0
    %198 = vmatpush1.msra.mxu0 %v179
    %199 = vmatprep.subr.mxu0 0.0
    %200 = vmatpush1.msra.mxu0 %v180
    %201 = vmatprep.subr.mxu0 0.0
    %202 = vmatpush1.msra.mxu0 %v181
    %203 = vmatprep.subr.mxu0 0.0
    %204 = vmatpush1.msra.mxu0 %v182
    %205 = vmatprep.subr.mxu0 0.0
    %206 = vmatpush1.msra.mxu0 %v183
    %207 = vmatprep.subr.mxu0 0.0
    %208 = vmatpush1.msra.mxu0 %v184
    %209 = vmatprep.subr.mxu0 0.0
    %210 = vmatpush1.msra.mxu0 0.0
    %211 = vmatprep.subr.mxu0 0.0
    %212 = vmatpush1.msra.mxu0 0.0
    %213 = vmatprep.subr.mxu0 0.0
    %214 = vmatpush1.msra.mxu0 0.0
    %215 = vmatprep.subr.mxu0 0.0
    %216 = vmatpush1.msra.mxu0 0.0
    %217 = vmatprep.subr.mxu0 0.0
    %218 = vmatpush1.msra.mxu0 0.0
    %219 = vmatprep.subr.mxu0 0.0
    %220 = vmatpush1.msra.mxu0 0.0
    %221 = vmatprep.subr.mxu0 0.0
    %222 = vmatpush1.msra.mxu0 0.0
    %223 = vmatprep.subr.mxu0 0.0
    %224 = vmatpush1.msra.mxu0 0.0
    %225 = vmatprep.subr.mxu0 0.0
    %226 = vmatpush1.msra.mxu0 0.0
    %227 = vmatprep.subr.mxu0 0.0
    %228 = vmatpush1.msra.mxu0 0.0
    %229 = vmatprep.subr.mxu0 0.0
    %230 = vmatpush1.msra.mxu0 0.0
    %231 = vmatprep.subr.mxu0 0.0
    %232 = vmatpush1.msra.mxu0 0.0
    %233 = vmatprep.subr.mxu0 0.0
    %234 = vmatpush1.msra.mxu0 0.0
    %235 = vmatprep.subr.mxu0 0.0
    %236 = vmatpush1.msra.mxu0 0.0
    %237 = vmatprep.subr.mxu0 0.0
    %238 = vmatpush1.msra.mxu0 0.0
    %239 = vmatprep.subr.mxu0 0.0
    %240 = vmatpush1.msra.mxu0 0.0
    %241 = vmatprep.subr.mxu0 0.0
    %242 = vmatpush1.msra.mxu0 0.0
    %243 = vmatprep.subr.mxu0 0.0
    %244 = vmatpush1.msra.mxu0 0.0
    %245 = vmatprep.subr.mxu0 0.0
    %246 = vmatpush1.msra.mxu0 0.0
    %247 = vmatprep.subr.mxu0 0.0
    %248 = vmatpush1.msra.mxu0 0.0
    %249 = vmatprep.subr.mxu0 0.0
    %250 = vmatpush1.msra.mxu0 0.0
    %251 = vmatprep.subr.mxu0 0.0
    %252 = vmatpush1.msra.mxu0 0.0
    %253 = vmatprep.subr.mxu0 0.0
    %254 = vmatpush1.msra.mxu0 0.0
    %255 = vmatprep.subr.mxu0 0.0
    %256 = vmatpush1.msra.mxu0 0.0
    %257 = vmatprep.mubr.f32.mxu0 0.0
    %258 = vmatmul.mubr.f32.gmra.mrb[0].mxu0 %v191
    %v259 = vpop.f32.mrb[0].mxu0
    %v260 = vadd.f32 %v189, %v259
    %v261 = vpop.f32.mrb[0].mxu0
    %262 = vdwg.mxu0
    %v263 = vld [vmem:[#allocation2 + $0x88] sm:$0x1]
    %265 = vset.pattern.permute.xlu0 0
    %266 = vperm.xlu0 %265, %v29
    %v267 = vpop.permute.xlu0 %266
    %v269 = vlaneseq
    %v270 = vshrl.u32 %v269, 7
    %v271 = vsub.s32 0, %v270
    %v272 = vrot.slane %v263, %v271
    %v273 = vmul.f32 %v267, %v272
    %v274 = vadd.f32 %v260, %v273
    %v275 = vld [vmem:[#allocation2 + $0x89] sm:$0x1]
    %276 = vset.pattern.permute.xlu0 1
    %277 = vperm.xlu0 %276, %v29
    %v278 = vpop.permute.xlu0 %277
    %v280 = vlaneseq
    %v281 = vshrl.u32 %v280, 7
    %v282 = vsub.s32 0, %v281
    %v283 = vrot.slane %v275, %v282
    %v284 = vmul.f32 %v278, %v283
    %v285 = vadd.f32 %v274, %v284
    %v286 = vmax.f32 %v285, 0.0
    %v287 = vld [vmem:[#allocation2 + $0x20] sm:$0x1]
    %v288 = vld [vmem:[#allocation2 + $0x28] sm:$0x1]
    %v289 = vlaneseq
    %v290 = vshrl.u32 %v289, 7
    %v291 = vsub.s32 0, %v290
    %v292 = vrot.slane %v287, %v291
    %v293 = vmul.f32 %v286, %v292
    %vm294 = vcmask 261120
    %v295 = vsel %vm294, %v293, 0.0
    %296 = vadd.xlane.f32.xlu0 %v295
    %v297 = vpop.xlane.xlu0 %296
    %v298 = vlaneseq
    %v299 = vshrl.u32 %v298, 7
    %v300 = vsub.s32 0, %v299
    %v301 = vrot.slane %v288, %v300
    %v302 = vadd.f32 %v297, %v301
    %vm303 = vcmask 7168
    %304 = vst.msk [vmem:[%s3] sm:$0xff] %vm303, %v302
    // Predicated region
    $region18: #{critic_forward.1} parent=1 // pred_check
      _
    $region19: #{critic_forward.1} parent=1 // pred_check_branch
      %306 = sbr.rel (0) target = $region21
    $region20: #{critic_forward.1} parent=1 // pred_region
      _
    $region21: #{critic_forward.1} parent=1 // pred_fallthru
      _
    // Predicated region
    $region22: #{critic_forward.1} parent=1 // pred_check
      _
    $region23: #{critic_forward.1} parent=1 // pred_check_branch
      %308 = sbr.rel (0) target = $region25
    $region24: #{critic_forward.1} parent=1 // pred_region
      _
    $region25: #{critic_forward.1} parent=1 // pred_fallthru
      _
    %309 = vsyncpa [#allocation3], 1

</llo_original>
